<compile_context>
chip_gen: v7x
topology: tpu7x:2x2x1
jax: 0.10.0
libtpu: 0.0.40
codegen_flags: <defaults>
</compile_context>

<pallas_src>
import math

import jax
import jax.numpy as jnp
from jax.experimental import pallas as pl
from jax.experimental.pallas import tpu as pltpu

_LANE = 128                                # vreg lane width
_ROW_ALIGN = 32                            # sublane packing: f32(8)/bf16(16)/int8(32)
_MAX_TM = 2048
_TARGET_STEPS = 4                          # even, >=4 grid steps when worthwhile
_MIN_SPLIT_BLOCK_BYTES = 2 * 1024 * 1024   # never shrink x blocks below ~2 MiB
_VMEM_BUDGET = 10 * 1024 * 1024            # double-buffered block-set budget


def _round_up(v, m):
    return -(-v // m) * m


def _conditioned_dropout_kernel(x_ref, sfa_ref, o_ref):
    """x_ref / o_ref: (tm, c*F); sfa_ref: (tm, F) with F % 128 == 0.

    One compare on the narrow sfa block, then a static Python loop over the c
    lane-aligned column groups.  No (tm, c*F) tiled-mask temporary is
    materialized.
    """
    mask = sfa_ref[...] == 0                  # exact float ==0 on original sfa
    F = sfa_ref.shape[-1]
    c = x_ref.shape[-1] // F
    zero = jnp.zeros((), dtype=o_ref.dtype)
    for j in range(c):                        # static unroll, whole-vreg slices
        sl = slice(j * F, (j + 1) * F)
        # jnp.where (NOT x*mask): masked_fill must map Inf/NaN x entries to 0.
        o_ref[:, sl] = jnp.where(mask, zero, x_ref[:, sl])


def _choose_tiles(rows, H, F, x_itemsize, s_itemsize, budget):
    """Pick (tm, tn): tn = c*F (c divides k, lane-aligned), tm a multiple of 32."""
    k = H // F

    def set_bytes(tm, tn):
        # x block + out block + sfa block, each double-buffered by the pipeline.
        return 2 * (2 * tm * tn * x_itemsize + tm * F * s_itemsize)

    # Wide-H guard: shrink the column tile (largest divisor of k that fits)
    # until a minimal 32-row block set fits the budget.
    c = k
    while c > 1 and set_bytes(_ROW_ALIGN, c * F) > budget:
        c -= 1
        while c > 1 and k % c:
            c -= 1
    tn = c * F
    # NOTE: F itself is never split (an sfa row must be whole); an f32 F wider
    # than ~40k columns would need a per-chip vmem_limit_bytes override.

    # Largest row tile keeping the double-buffered block set within budget.
    per_row = 2 * (2 * tn * x_itemsize + F * s_itemsize)
    tm = max(_ROW_ALIGN, (budget // per_row) // _ROW_ALIGN * _ROW_ALIGN)
    tm = min(tm, _MAX_TM)
    if tm >= rows:
        return rows, tn                       # one block spanning the full row extent

    # Deepen the grid to an even step count >= _TARGET_STEPS when the problem
    # is large enough: both v7x TCs get >=2 blocks and all chips pipeline.
    col_steps = H // tn
    row_steps = pl.cdiv(rows, tm)
    steps = row_steps * col_steps
    desired = None
    if steps < _TARGET_STEPS:
        desired = pl.cdiv(_TARGET_STEPS, col_steps)
        if (desired * col_steps) % 2:
            desired += 1
    elif steps % 2:                           # odd counts idle one v7x core
        desired = row_steps + 1
    if desired is not None and desired > row_steps:
        min_tm = _round_up(
            max(_ROW_ALIGN, _MIN_SPLIT_BLOCK_BYTES // (tn * x_itemsize)),
            _ROW_ALIGN)
        cand = min(tm, _round_up(pl.cdiv(rows, desired), _ROW_ALIGN))
        new_total = pl.cdiv(rows, cand) * col_steps
        if cand >= min_tm and new_total % 2 == 0 and new_total >= _TARGET_STEPS:
            tm = cand
    return tm, tn


def conditioned_dropout_ref(x, sfa):
    """Pure-JAX reference (== PyTorch forward). Also the fused-XLA fast path."""
    k = x.shape[-1] // sfa.shape[-1]
    reps = [1] * (x.ndim - 1) + [k]
    return jnp.where(jnp.tile(sfa, reps) == 0, jnp.zeros((), x.dtype), x)


def conditioned_dropout(x, sfa, *, donate_x=False,
                        vmem_budget_bytes=_VMEM_BUDGET):
    """Pallas implementation of ConditionedDropout.forward(x, sfa)."""
    H = x.shape[-1]
    F = sfa.shape[-1]
    assert H % F == 0, "x.shape[-1] must be a multiple of sfa.shape[-1]"
    assert x.shape[:-1] == sfa.shape[:-1], "leading dims must match"

    # Non-lane-aligned feature groups: the fused XLA where is roofline-optimal
    # (no materialized mask, no pad/slice); a Pallas call cannot beat it here.
    if F % _LANE != 0:
        return conditioned_dropout_ref(x, sfa)

    rows = math.prod(x.shape[:-1])
    if rows == 0:
        return x
    x2 = x.reshape(rows, H)                   # leading-dim flatten: no copy
    sfa2 = sfa.reshape(rows, F)

    tm, tn = _choose_tiles(rows, H, F, x2.dtype.itemsize, sfa2.dtype.itemsize,
                           vmem_budget_bytes)
    # Ragged rows: Pallas clips the boundary block -- no pad, no output slice.
    grid = (pl.cdiv(rows, tm), H // tn)

    out = pl.pallas_call(
        _conditioned_dropout_kernel,
        out_shape=jax.ShapeDtypeStruct((rows, H), x2.dtype),
        grid_spec=pltpu.PrefetchScalarGridSpec(
            num_scalar_prefetch=0,
            grid=grid,
            in_specs=[
                pl.BlockSpec((tm, tn), lambda i, j: (i, j)),
                pl.BlockSpec((tm, F), lambda i, j: (i, 0)),   # sfa reused per col
            ],
            out_specs=pl.BlockSpec((tm, tn), lambda i, j: (i, j)),
        ),
        compiler_params=pltpu.CompilerParams(
            dimension_semantics=("parallel", "parallel")),
        # Alias only when the caller actually donates x; otherwise XLA would
        # insert a defensive full copy of x to satisfy the alias.
        input_output_aliases={0: 0} if donate_x else {},
    )(x2, sfa2)
    return out.reshape(x.shape)


if __name__ == "__main__":
    key = jax.random.PRNGKey(0)
    kx1, ks1, kx2, ks2, kx3, ks3 = jax.random.split(key, 6)
    B, S = 2, 8

    # Case 1: lane-aligned features (F=128, H=512) -> Pallas kernel, single block.
    F1, k1 = 128, 4
    H1 = F1 * k1
    x1 = jax.random.normal(kx1, (B, S, H1), dtype=jnp.float32)
    sfa1 = jax.random.bernoulli(ks1, p=0.5, shape=(B, S, F1)).astype(jnp.float32)
    x1 = x1.at[0, 0, 0].set(jnp.inf)          # masked_fill must zero Inf too
    sfa1 = sfa1.at[0, 0, 0].set(0.0)
    ref1 = conditioned_dropout_ref(x1, sfa1)
    out1 = jax.block_until_ready(conditioned_dropout(x1, sfa1))
    assert out1.shape == x1.shape and out1.dtype == x1.dtype
    assert jnp.array_equal(out1, ref1), "lane-aligned single-block mismatch"

    # Case 2: toy non-lane-aligned features (F=8, H=32) -> fused-XLA path.
    F2, k2 = 8, 4
    H2 = F2 * k2
    x2 = jax.random.normal(kx2, (B, S, H2), dtype=jnp.float32)
    sfa2 = jax.random.bernoulli(ks2, p=0.5, shape=(B, S, F2)).astype(jnp.float32)
    ref2 = conditioned_dropout_ref(x2, sfa2)
    out2 = jax.block_until_ready(conditioned_dropout(x2, sfa2))
    assert out2.shape == x2.shape and out2.dtype == x2.dtype
    assert jnp.array_equal(out2, ref2), "fused-XLA path mismatch"

    # Case 3: tiny VMEM budget to exercise column tiling, multi-step grid and
    # ragged-row boundary clipping (rows=48, tm=32 -> last block clipped).
    F3, k3 = 128, 4
    H3 = F3 * k3
    rows3 = 48
    x3 = jax.random.normal(kx3, (rows3, H3), dtype=jnp.float32)
    sfa3 = jax.random.bernoulli(ks3, p=0.5, shape=(rows3, F3)).astype(jnp.float32)
    ref3 = conditioned_dropout_ref(x3, sfa3)
    out3 = jax.block_until_ready(
        conditioned_dropout(x3, sfa3, vmem_budget_bytes=128 * 1024))
    assert out3.shape == x3.shape and out3.dtype == x3.dtype
    assert jnp.array_equal(out3, ref3), "tiled/ragged path mismatch"

    print("KERNEL_OK")
</pallas_src>

<mosaic_0001>
module attributes {stable_mosaic.version = 11 : i64} {
  func.func @_conditioned_dropout_kernel(%arg0: i32, %arg1: i32, %arg2: memref<16x512xf32, #tpu.memory_space<vmem>>, %arg3: memref<16x128xf32, #tpu.memory_space<vmem>>, %arg4: memref<16x512xf32, #tpu.memory_space<vmem>>) attributes {dimension_semantics = [#tpu.dimension_semantics<parallel>, #tpu.dimension_semantics<parallel>], iteration_bounds = array<i64: 1, 1>, scalar_prefetch = 0 : i64, scratch_operands = 0 : i64, tpu.core_type = #tpu.core_type<tc>, window_params = [{transform_indices = @transform_0, window_bounds = array<i64: 16, 512>}, {transform_indices = @transform_1, window_bounds = array<i64: 16, 128>}, {transform_indices = @transform_2, window_bounds = array<i64: 16, 512>}]} {
    %c0 = arith.constant 0 : index
    %c0_0 = arith.constant 0 : index
    %0 = vector.load %arg3[%c0, %c0_0] : memref<16x128xf32, #tpu.memory_space<vmem>>, vector<16x128xf32>
    %cst = arith.constant 0.000000e+00 : f32
    %1 = vector.broadcast %cst : f32 to vector<16x128xf32>
    %2 = arith.cmpf oeq, %0, %1 : vector<16x128xf32>
    %c0_1 = arith.constant 0 : index
    %c0_2 = arith.constant 0 : index
    %3 = vector.load %arg2[%c0_1, %c0_2] : memref<16x512xf32, #tpu.memory_space<vmem>>, vector<16x128xf32>
    %cst_3 = arith.constant 0.000000e+00 : f32
    %4 = vector.broadcast %cst_3 : f32 to vector<16x128xf32>
    %5 = arith.select %2, %4, %3 : vector<16x128xi1>, vector<16x128xf32>
    %c0_4 = arith.constant 0 : index
    %c0_5 = arith.constant 0 : index
    %6 = vector.load %arg4[%c0_4, %c0_5] : memref<16x512xf32, #tpu.memory_space<vmem>>, vector<16x128xf32>
    tpu.vector_store %arg4[%c0_4, %c0_5], %5 {strides = array<i32>} : memref<16x512xf32, #tpu.memory_space<vmem>>, vector<16x128xf32>,
    %c0_6 = arith.constant 0 : index
    %c128 = arith.constant 128 : index
    %7 = vector.load %arg2[%c0_6, %c128] : memref<16x512xf32, #tpu.memory_space<vmem>>, vector<16x128xf32>
    %cst_7 = arith.constant 0.000000e+00 : f32
    %8 = vector.broadcast %cst_7 : f32 to vector<16x128xf32>
    %9 = arith.select %2, %8, %7 : vector<16x128xi1>, vector<16x128xf32>
    %c0_8 = arith.constant 0 : index
    %c128_9 = arith.constant 128 : index
    %10 = vector.load %arg4[%c0_8, %c128_9] : memref<16x512xf32, #tpu.memory_space<vmem>>, vector<16x128xf32>
    tpu.vector_store %arg4[%c0_8, %c128_9], %9 {strides = array<i32>} : memref<16x512xf32, #tpu.memory_space<vmem>>, vector<16x128xf32>,
    %c0_10 = arith.constant 0 : index
    %c256 = arith.constant 256 : index
    %11 = vector.load %arg2[%c0_10, %c256] : memref<16x512xf32, #tpu.memory_space<vmem>>, vector<16x128xf32>
    %cst_11 = arith.constant 0.000000e+00 : f32
    %12 = vector.broadcast %cst_11 : f32 to vector<16x128xf32>
    %13 = arith.select %2, %12, %11 : vector<16x128xi1>, vector<16x128xf32>
    %c0_12 = arith.constant 0 : index
    %c256_13 = arith.constant 256 : index
    %14 = vector.load %arg4[%c0_12, %c256_13] : memref<16x512xf32, #tpu.memory_space<vmem>>, vector<16x128xf32>
    tpu.vector_store %arg4[%c0_12, %c256_13], %13 {strides = array<i32>} : memref<16x512xf32, #tpu.memory_space<vmem>>, vector<16x128xf32>,
    %c0_14 = arith.constant 0 : index
    %c384 = arith.constant 384 : index
    %15 = vector.load %arg2[%c0_14, %c384] : memref<16x512xf32, #tpu.memory_space<vmem>>, vector<16x128xf32>
    %cst_15 = arith.constant 0.000000e+00 : f32
    %16 = vector.broadcast %cst_15 : f32 to vector<16x128xf32>
    %17 = arith.select %2, %16, %15 : vector<16x128xi1>, vector<16x128xf32>
    %c0_16 = arith.constant 0 : index
    %c384_17 = arith.constant 384 : index
    %18 = vector.load %arg4[%c0_16, %c384_17] : memref<16x512xf32, #tpu.memory_space<vmem>>, vector<16x128xf32>
    tpu.vector_store %arg4[%c0_16, %c384_17], %17 {strides = array<i32>} : memref<16x512xf32, #tpu.memory_space<vmem>>, vector<16x128xf32>,
    return
  }
  func.func @transform_0(%arg0: i32, %arg1: i32) -> (i32, i32) {
    %c0_i32 = arith.constant 0 : i32
    return %arg0, %arg1 : i32, i32
  }
  func.func @transform_1(%arg0: i32, %arg1: i32) -> (i32, i32) {
    %c0_i32 = arith.constant 0 : i32
    %c0_i32_0 = arith.constant 0 : i32
    return %arg0, %c0_i32 : i32, i32
  }
  func.func @transform_2(%arg0: i32, %arg1: i32) -> (i32, i32) {
    %c0_i32 = arith.constant 0 : i32
    return %arg0, %arg1 : i32, i32
  }
}

</mosaic_0001>

<llo_original>
// kernel: tpu_custom_call.1
$region0: #{tpu_custom_call.1}
  #allocation0 [shape = 'u32[]', space=smem, size = 0x4, offset = 0x4, fixed_abs, tag = 'smem constant byte address 0x4 - core index']
  #allocation1 [shape = 'u32[144,128]{1,0:T(1,128)}', space=vmem, size = 0x12000, scoped, tag = 'internal scratch']
  %s0 = inlined_call_operand.hbm [shape: f32[16,512], index: 0, kind: input, shape index: {}]
  %s1 = inlined_call_operand.hbm [shape: f32[16,128], index: 1, kind: input, shape index: {}]
  %s2 = inlined_call_operand.hbm [shape: f32[16,512], index: 2, kind: output, shape index: {}]
  %s3 = sld [smem:[#allocation0]]
  $region26: #{tpu_custom_call.1} parent=0
    _
  %s5 = ssub.s32 1, %s3
  %s6 = scalar_select 0, %s5, %s3
  $region1: #{tpu_custom_call.1} parent=0
    #allocation2 [shape = 'u8[32768]{0}', space=vmem, size = 0x8000, scoped, tag = 'input window, operand 0, single buffered']
    #allocation3 [shape = 's32[1]{0}', space=sflag, size = 0x4, scoped, tag = 'scoped memory for tpu_custom_call.1']
    #allocation4 [shape = 's32[1]{0}', space=sflag, size = 0x4, scoped, tag = 'scoped memory for tpu_custom_call.1']
    #allocation5 [shape = 'u8[8192]{0}', space=vmem, size = 0x2000, scoped, tag = 'input window, operand 1, single buffered']
    #allocation6 [shape = 's32[1]{0}', space=sflag, size = 0x4, scoped, tag = 'scoped memory for tpu_custom_call.1']
    #allocation7 [shape = 'u8[32768]{0}', space=vmem, size = 0x8000, scoped, tag = 'output window, operand 0, single buffered']
    %7 = vsyncpa [#allocation3], 0
    %8 = vsyncpa [#allocation6], 0
    %9 = vsyncpa [#allocation4], 0
    // Predicated region
    $region2: #{tpu_custom_call.1} parent=1 // pred_check
      _
    $region3: #{tpu_custom_call.1} parent=1 // pred_check_branch
      %11 = sbr.rel (0) target = $region5
    $region4: #{tpu_custom_call.1} parent=1 // pred_region
      %s13 = ssub.s32 1024, 1024
      %14 = vsyncadd [#allocation3], %s13
      %s15 = sshll.u32 [#allocation2], 4
      %s16 = int_to_ptr.vmem [resolvable:$true] %s15
      %21 = dma.hbm_to_vmem [thread:$0]  %s0, 1024, %s16, [#allocation3], 512, 512, 32
    $region5: #{tpu_custom_call.1} parent=1 // pred_fallthru
      _
    // Predicated region
    $region6: #{tpu_custom_call.1} parent=1 // pred_check
      _
    $region7: #{tpu_custom_call.1} parent=1 // pred_check_branch
      %23 = sbr.rel (0) target = $region9
    $region8: #{tpu_custom_call.1} parent=1 // pred_region
      %s25 = ssub.s32 256, 256
      %26 = vsyncadd [#allocation6], %s25
      %s27 = sshll.u32 [#allocation5], 4
      %s28 = int_to_ptr.vmem [resolvable:$true] %s27
      %33 = dma.hbm_to_vmem [thread:$0]  %s1, 256, %s28, [#allocation6], 128, 128, 8
    $region9: #{tpu_custom_call.1} parent=1 // pred_fallthru
      _
    // Predicated region
    $region10: #{tpu_custom_call.1} parent=1 // pred_check
      _
    $region11: #{tpu_custom_call.1} parent=1 // pred_check_branch
      %35 = sbr.rel (0) target = $region13
    $region12: #{tpu_custom_call.1} parent=1 // pred_region
      %36 = dma.done [#allocation3], 1024
    $region13: #{tpu_custom_call.1} parent=1 // pred_fallthru
      _
    // Predicated region
    $region14: #{tpu_custom_call.1} parent=1 // pred_check
      _
    $region15: #{tpu_custom_call.1} parent=1 // pred_check_branch
      %38 = sbr.rel (0) target = $region17
    $region16: #{tpu_custom_call.1} parent=1 // pred_region
      %39 = dma.done [#allocation6], 256
    $region17: #{tpu_custom_call.1} parent=1 // pred_fallthru
      _
    %v40 = vld [vmem:[#allocation5] sm:$0xff]
    %v41 = vld [vmem:[#allocation5 + $0x8] sm:$0xff]
    %vm42 = vcmp.eq.f32.partialorder %v40, 0.0
    %vm43 = vcmp.eq.f32.partialorder %v41, 0.0
    %v44 = vld [vmem:[#allocation2] sm:$0xff]
    %v45 = vld [vmem:[#allocation2 + $0x20] sm:$0xff]
    %v46 = vsel %vm42, 0.0, %v44
    %v47 = vsel %vm43, 0.0, %v45
    %48 = vst [vmem:[#allocation7] sm:$0xff] %v46
    %49 = vst [vmem:[#allocation7 + $0x20] sm:$0xff] %v47
    %v50 = vld [vmem:[#allocation2 + $0x8] sm:$0xff]
    %v51 = vld [vmem:[#allocation2 + $0x28] sm:$0xff]
    %v52 = vsel %vm42, 0.0, %v50
    %v53 = vsel %vm43, 0.0, %v51
    %54 = vst [vmem:[#allocation7 + $0x8] sm:$0xff] %v52
    %55 = vst [vmem:[#allocation7 + $0x28] sm:$0xff] %v53
    %v56 = vld [vmem:[#allocation2 + $0x10] sm:$0xff]
    %v57 = vld [vmem:[#allocation2 + $0x30] sm:$0xff]
    %v58 = vsel %vm42, 0.0, %v56
    %v59 = vsel %vm43, 0.0, %v57
    %60 = vst [vmem:[#allocation7 + $0x10] sm:$0xff] %v58
    %61 = vst [vmem:[#allocation7 + $0x30] sm:$0xff] %v59
    %v62 = vld [vmem:[#allocation2 + $0x18] sm:$0xff]
    %v63 = vld [vmem:[#allocation2 + $0x38] sm:$0xff]
    %v64 = vsel %vm42, 0.0, %v62
    %v65 = vsel %vm43, 0.0, %v63
    %66 = vst [vmem:[#allocation7 + $0x18] sm:$0xff] %v64
    %67 = vst [vmem:[#allocation7 + $0x38] sm:$0xff] %v65
    // Predicated region
    $region18: #{tpu_custom_call.1} parent=1 // pred_check
      _
    $region19: #{tpu_custom_call.1} parent=1 // pred_check_branch
      %69 = sbr.rel (0) target = $region21
    $region20: #{tpu_custom_call.1} parent=1 // pred_region
      %s71 = ssub.s32 1024, 1024
      %72 = vsyncadd [#allocation4], %s71
      %s73 = sshll.u32 [#allocation7], 4
      %s74 = int_to_ptr.vmem [resolvable:$true] %s73
      %79 = dma.vmem_to_hbm [thread:$0]  %s74, 1024, %s2, [#allocation4], 512, 512, 32
    $region21: #{tpu_custom_call.1} parent=1 // pred_fallthru
      _
    // Predicated region
    $region22: #{tpu_custom_call.1} parent=1 // pred_check
      _
    $region23: #{tpu_custom_call.1} parent=1 // pred_check_branch
      %81 = sbr.rel (0) target = $region25
    $region24: #{tpu_custom_call.1} parent=1 // pred_region
      %82 = dma.done [#allocation4], 1024
    $region25: #{tpu_custom_call.1} parent=1 // pred_fallthru
      _
    %83 = vsyncpa [#allocation3], 1
    %84 = vsyncpa [#allocation6], 1
    %85 = vsyncpa [#allocation4], 1

</llo_original>
